<compile_context>
chip_gen: v5e
topology: v5e:2x2
jax: 0.10.0
libtpu: 0.0.40
codegen_flags: <defaults>
</compile_context>

<pallas_src>
import jax
import jax.numpy as jnp
from jax.experimental import pallas as pl
from jax.experimental.pallas import tpu as pltpu

IN_FEATURES = 100
OUT_FEATURES = 10

TB_MAX = 2048        # max batch rows per tile (multiple of 8)
SMALL_BATCH = 8192   # below this, plain fused XLA dot+add wins on v5e/v6e/v7x


def linear_kernel(x_ref, w_ref, b_ref, o_ref):
    # One MXU pass per (tb, 100) x-tile, f32 accumulation, bias add on the VPU.
    acc = jnp.dot(x_ref[...], w_ref[...], preferred_element_type=jnp.float32)
    o_ref[...] = (acc + b_ref[...]).astype(o_ref.dtype)


def _round_up(n, m):
    return ((n + m - 1) // m) * m


def _choose_tb(B):
    # Big tiles to amortize per-step overhead, but keep grid_b >= 2 when there
    # is enough work so both TensorCores get a share on v7x.
    half = pl.cdiv(B, 2)
    return max(8, min(TB_MAX, _round_up(half, 8)))


def _pallas_linear(x, w_t, b):
    """Pallas path. x: (B, 100) f32, w_t: (100, 10) f32, b: (1, 10) f32."""
    B = x.shape[0]
    tb = _choose_tb(B)
    grid_b = pl.cdiv(B, tb)

    cost = pl.CostEstimate(
        flops=2 * B * IN_FEATURES * OUT_FEATURES,
        transcendentals=0,
        bytes_accessed=B * (IN_FEATURES + OUT_FEATURES) * 4
        + (IN_FEATURES * OUT_FEATURES + OUT_FEATURES) * 4,
    )

    out = pl.pallas_call(
        linear_kernel,
        out_shape=jax.ShapeDtypeStruct((B, OUT_FEATURES), jnp.float32),
        grid=(grid_b,),
        in_specs=[
            # Streamed x tile; last dim = full array extent (100), legal.
            pl.BlockSpec((tb, IN_FEATURES), lambda i: (i, 0)),
            # VMEM-resident weights / bias (constant index map, no re-DMA).
            pl.BlockSpec((IN_FEATURES, OUT_FEATURES), lambda i: (0, 0)),
            pl.BlockSpec((1, OUT_FEATURES), lambda i: (0, 0)),
        ],
        # True-width output: OOB writes of the ragged last tile are dropped.
        out_specs=pl.BlockSpec((tb, OUT_FEATURES), lambda i: (i, 0)),
        compiler_params=pltpu.CompilerParams(
            dimension_semantics=("parallel",),
        ),
        cost_estimate=cost,
    )(x, w_t, b)

    return out


def linear_forward(x, w_t, b, force_pallas=False):
    """x: (B, 100) f32, w_t: (100, 10) f32, b: (1, 10) f32 -> (B, 10) f32."""
    B = x.shape[0]
    if (B <= SMALL_BATCH) and not force_pallas:
        # Tiny/medium batches: launch overhead dominates; fused XLA op wins.
        return x @ w_t + b
    return _pallas_linear(x, w_t, b)


def init_params(key):
    # Deterministic init mimicking nn.Linear's uniform(-1/sqrt(in), 1/sqrt(in)).
    kw, kb = jax.random.split(key)
    bound = 1.0 / jnp.sqrt(jnp.float32(IN_FEATURES))
    # PyTorch stores weight as (out, in); keep that convention, transpose once
    # for the kernel's (in, out) layout.
    w = jax.random.uniform(kw, (OUT_FEATURES, IN_FEATURES), jnp.float32,
                           minval=-bound, maxval=bound)
    b = jax.random.uniform(kb, (OUT_FEATURES,), jnp.float32,
                           minval=-bound, maxval=bound)
    return w, b


if __name__ == "__main__":
    key = jax.random.PRNGKey(0)
    k_x, k_x2, k_p = jax.random.split(key, 3)

    w, b = init_params(k_p)
    w_t = jnp.transpose(w)              # (100, 10)
    b2d = b.reshape(1, OUT_FEATURES)    # (1, 10)

    # --- small-batch test (batch=2): fast path by default, Pallas when forced.
    batch = 2
    x = jax.random.normal(k_x, (batch, IN_FEATURES), jnp.float32)
    ref = x @ w.T + b

    out_fast = jax.block_until_ready(linear_forward(x, w_t, b2d))
    assert out_fast.shape == (batch, OUT_FEATURES)
    assert jnp.allclose(out_fast, ref, atol=1e-4, rtol=1e-4)

    out_pallas = jax.block_until_ready(
        linear_forward(x, w_t, b2d, force_pallas=True))
    assert out_pallas.shape == (batch, OUT_FEATURES)
    assert jnp.allclose(out_pallas, ref, atol=1e-4, rtol=1e-4)

    # --- multi-tile test: exercises the batch grid (grid_b=2, tb=504) and the
    #     ragged final tile handled by Pallas (dropped OOB writes), no padding.
    batch2 = 1000
    x2 = jax.random.normal(k_x2, (batch2, IN_FEATURES), jnp.float32)
    ref2 = x2 @ w.T + b
    out2 = jax.block_until_ready(
        linear_forward(x2, w_t, b2d, force_pallas=True))
    assert out2.shape == (batch2, OUT_FEATURES)
    assert jnp.allclose(out2, ref2, atol=1e-4, rtol=1e-4)

    print("KERNEL_OK")
</pallas_src>

<mosaic_0001>
module attributes {stable_mosaic.version = 11 : i64} {
  func.func @linear_kernel(%arg0: i32, %arg1: memref<8x100xf32, #tpu.memory_space<vmem>>, %arg2: memref<100x10xf32, #tpu.memory_space<vmem>>, %arg3: memref<1x10xf32, #tpu.memory_space<vmem>>, %arg4: memref<8x10xf32, #tpu.memory_space<vmem>>) attributes {dimension_semantics = [#tpu.dimension_semantics<parallel>], iteration_bounds = array<i64: 1>, scalar_prefetch = 0 : i64, scratch_operands = 0 : i64, tpu.core_type = #tpu.core_type<tc>, window_params = [{transform_indices = @transform_0, window_bounds = array<i64: 8, 100>}, {pipeline_mode = #tpu.pipeline_mode<synchronous>, transform_indices = @transform_1, window_bounds = array<i64: 100, 10>}, {pipeline_mode = #tpu.pipeline_mode<synchronous>, transform_indices = @transform_2, window_bounds = array<i64: 1, 10>}, {transform_indices = @transform_3, window_bounds = array<i64: 8, 10>}]} {
    %c0 = arith.constant 0 : index
    %c0_0 = arith.constant 0 : index
    %0 = vector.load %arg1[%c0, %c0_0] : memref<8x100xf32, #tpu.memory_space<vmem>>, vector<8x100xf32>
    %c0_1 = arith.constant 0 : index
    %c0_2 = arith.constant 0 : index
    %1 = vector.load %arg2[%c0_1, %c0_2] : memref<100x10xf32, #tpu.memory_space<vmem>>, vector<100x10xf32>
    %cst = arith.constant dense<0.000000e+00> : vector<8x10xf32>
    %2 = tpu.matmul %0, %1, %cst {dimension_numbers = #tpu.dot_dimension_numbers<[1], [0], [0], [1], [0, 0, 1, 1], [], []>} : vector<8x100xf32>, vector<100x10xf32>, vector<8x10xf32> -> vector<8x10xf32>
    %c0_3 = arith.constant 0 : index
    %c0_4 = arith.constant 0 : index
    %3 = vector.load %arg3[%c0_3, %c0_4] : memref<1x10xf32, #tpu.memory_space<vmem>>, vector<1x10xf32>
    %4 = vector.broadcast %3 : vector<1x10xf32> to vector<8x10xf32>
    %5 = arith.addf %2, %4 : vector<8x10xf32>
    %c0_5 = arith.constant 0 : index
    %c0_6 = arith.constant 0 : index
    %6 = vector.load %arg4[%c0_5, %c0_6] : memref<8x10xf32, #tpu.memory_space<vmem>>, vector<8x10xf32>
    tpu.vector_store %arg4[%c0_5, %c0_6], %5 {strides = array<i32>} : memref<8x10xf32, #tpu.memory_space<vmem>>, vector<8x10xf32>,
    return
  }
  func.func @transform_0(%arg0: i32) -> (i32, i32) {
    %c0_i32 = arith.constant 0 : i32
    %c0_i32_0 = arith.constant 0 : i32
    return %arg0, %c0_i32 : i32, i32
  }
  func.func @transform_1(%arg0: i32) -> (i32, i32) {
    %c0_i32 = arith.constant 0 : i32
    %c0_i32_0 = arith.constant 0 : i32
    %c0_i32_1 = arith.constant 0 : i32
    return %c0_i32, %c0_i32_0 : i32, i32
  }
  func.func @transform_2(%arg0: i32) -> (i32, i32) {
    %c0_i32 = arith.constant 0 : i32
    %c0_i32_0 = arith.constant 0 : i32
    %c0_i32_1 = arith.constant 0 : i32
    return %c0_i32, %c0_i32_0 : i32, i32
  }
  func.func @transform_3(%arg0: i32) -> (i32, i32) {
    %c0_i32 = arith.constant 0 : i32
    %c0_i32_0 = arith.constant 0 : i32
    return %arg0, %c0_i32 : i32, i32
  }
}

</mosaic_0001>

<llo_original>
// kernel: tpu_custom_call.1
$region0: #{tpu_custom_call.1}
  #allocation0 [shape = 'u32[]', space=smem, size = 0x4, offset = 0x4, fixed_abs, tag = 'smem constant byte address 0x4 - core index']
  #allocation1 [shape = 'u32[72,128]{1,0:T(1,128)}', space=vmem, size = 0x9000, scoped, tag = 'internal scratch']
  %s0 = inlined_call_operand.vmem [shape: f32[2,100], index: 0, kind: input, shape index: {}]
  %s1 = inlined_call_operand.vmem [shape: f32[100,10], index: 1, kind: input, shape index: {}]
  %s2 = inlined_call_operand.vmem [shape: f32[1,10], index: 2, kind: input, shape index: {}]
  %s3 = inlined_call_operand.hbm [shape: f32[2,10], index: 3, kind: output, shape index: {}]
  %s4 = sld [smem:[#allocation0]]
  $region22: #{tpu_custom_call.1} parent=0
    _
  %s6 = ssub.s32 1, %s4
  %s7 = scalar_select 0, %s6, %s4
  $region1: #{tpu_custom_call.1} parent=0
    #allocation2 [shape = 'u8[4096]{0}', space=vmem, size = 0x1000, scoped, tag = 'output window, operand 0, single buffered']
    #allocation3 [shape = 's32[1]{0}', space=sflag, size = 0x4, scoped, tag = 'scoped memory for tpu_custom_call.1']
    %8 = vsyncpa [#allocation3], 0
    // Predicated region
    $region2: #{tpu_custom_call.1} parent=1 // pred_check
      _
    $region3: #{tpu_custom_call.1} parent=1 // pred_check_branch
      %10 = sbr.rel (0) target = $region5
    $region4: #{tpu_custom_call.1} parent=1 // pred_region
      _
    $region5: #{tpu_custom_call.1} parent=1 // pred_fallthru
      _
    // Predicated region
    $region6: #{tpu_custom_call.1} parent=1 // pred_check
      _
    $region7: #{tpu_custom_call.1} parent=1 // pred_check_branch
      %12 = sbr.rel (0) target = $region9
    $region8: #{tpu_custom_call.1} parent=1 // pred_region
      _
    $region9: #{tpu_custom_call.1} parent=1 // pred_fallthru
      _
    // Predicated region
    $region10: #{tpu_custom_call.1} parent=1 // pred_check
      _
    $region11: #{tpu_custom_call.1} parent=1 // pred_check_branch
      %14 = sbr.rel (0) target = $region13
    $region12: #{tpu_custom_call.1} parent=1 // pred_region
      _
    $region13: #{tpu_custom_call.1} parent=1 // pred_fallthru
      _
    %v15 = vld [vmem:[%s0] sm:$0xff]
    %v16 = vld [vmem:[%s1] sm:$0xff]
    %v17 = vld [vmem:[%s1 + $0x8] sm:$0xff]
    %v18 = vld [vmem:[%s1 + $0x10] sm:$0xff]
    %v19 = vld [vmem:[%s1 + $0x18] sm:$0xff]
    %v20 = vld [vmem:[%s1 + $0x20] sm:$0xff]
    %v21 = vld [vmem:[%s1 + $0x28] sm:$0xff]
    %v22 = vld [vmem:[%s1 + $0x30] sm:$0xff]
    %v23 = vld [vmem:[%s1 + $0x38] sm:$0xff]
    %v24 = vld [vmem:[%s1 + $0x40] sm:$0xff]
    %v25 = vld [vmem:[%s1 + $0x48] sm:$0xff]
    %v26 = vld [vmem:[%s1 + $0x50] sm:$0xff]
    %v27 = vld [vmem:[%s1 + $0x58] sm:$0xff]
    %v28 = vld [vmem:[%s1 + $0x60] sm:$0xf]
    %v29 = vld [vmem:[%s2] sm:$0x1]
    %v31 = vperm.slane %v29, 0
    %vm33 = vcmask 818176
    %v35 = vsel %vm33, %v15, 0
    %vm37 = vcmask 1043456
    %v39 = vsel %vm37, %v28, 0
    %41 = vmatpush.msra.mxu0 0.0
    %42 = vmatpush.msra.mxu0 0.0
    %43 = vmatpush.msra.mxu0 0.0
    %44 = vmatpush.msra.mxu0 %v39
    %45 = vmatpush.msra.mxu0 %v27
    %46 = vmatpush.msra.mxu0 %v26
    %47 = vmatpush.msra.mxu0 %v25
    %48 = vmatpush.msra.mxu0 %v24
    %49 = vmatpush.msra.mxu0 %v23
    %50 = vmatpush.msra.mxu0 %v22
    %51 = vmatpush.msra.mxu0 %v21
    %52 = vmatpush.msra.mxu0 %v20
    %53 = vmatpush.msra.mxu0 %v19
    %54 = vmatpush.msra.mxu0 %v18
    %55 = vmatpush.msra.mxu0 %v17
    %56 = vmatpush.msra.mxu0 %v16
    %57 = vmatmul.f32.gmra.mxu0 %v35
    %v58 = vpop.f32.mrf.mxu0
    %v59 = vadd.f32 %v31, %v58
    %60 = vdwg.mxu0
    %vm61 = vcmask 80896
    %62 = vst.msk [vmem:[#allocation2] sm:$0xff] %vm61, %v59
    // Predicated region
    $region14: #{tpu_custom_call.1} parent=1 // pred_check
      _
    $region15: #{tpu_custom_call.1} parent=1 // pred_check_branch
      %64 = sbr.rel (0) target = $region17
    $region16: #{tpu_custom_call.1} parent=1 // pred_region
      %66 = vsyncadd [#allocation3], 96
      %s67 = sshll.u32 [#allocation2], 4
      %s68 = int_to_ptr.vmem [resolvable:$true] %s67
      %s69 = sshll.u32 %s3, 4
      %s70 = int_to_ptr.hbm [resolvable:$true] %s69
      %75 = dma.vmem_to_hbm [thread:$0]  %s68, 32, %s70, [#allocation3], 32, 32, 2
    $region17: #{tpu_custom_call.1} parent=1 // pred_fallthru
      _
    // Predicated region
    $region18: #{tpu_custom_call.1} parent=1 // pred_check
      _
    $region19: #{tpu_custom_call.1} parent=1 // pred_check_branch
      %77 = sbr.rel (0) target = $region21
    $region20: #{tpu_custom_call.1} parent=1 // pred_region
      %79 = dma.done [#allocation3], 128
    $region21: #{tpu_custom_call.1} parent=1 // pred_fallthru
      _
    %80 = vsyncpa [#allocation3], 1

</llo_original>
